<compile_context>
chip_gen: v6e
topology: v6e:2x2x1
jax: 0.10.0
libtpu: 0.0.40
codegen_flags: <defaults>
</compile_context>

<pallas_src>
import numpy as np
import jax
import jax.numpy as jnp
from jax.experimental import pallas as pl
from jax.experimental.pallas import tpu as pltpu


_SUBLANES = 8                          # row-tile granularity (f32 sublanes)
_MAX_ROW_TILE = 2048                   # amortizes ~0.35us/step grid overhead
_VMEM_BUDGET = 32 * 1024 * 1024        # conservative across v5e/v6e/v7x
_VMEM_SLACK = 2 * 1024 * 1024          # Mosaic internal scratch headroom
_RESIDENT_SINGLE_BUF_BYTES = 1 << 20   # only single-buffer resident blocks this big


def _round_up(x: int, m: int) -> int:
    return ((x + m - 1) // m) * m


def _round_down(x: int, m: int) -> int:
    return (x // m) * m


def _resident_spec(shape, nbytes):
    """BlockSpec for a block that never changes across the grid (index_map -> (0,0)).

    When the block is large, request a single buffer so the default
    double-buffering doesn't waste VMEM on a one-shot DMA."""
    index_map = lambda i: (0, 0)
    if nbytes >= _RESIDENT_SINGLE_BUF_BYTES:
        try:
            return pl.BlockSpec(shape, index_map, pipeline_mode=pl.Buffered(1))
        except TypeError:      # older API without pipeline_mode: fall back
            pass
    return pl.BlockSpec(shape, index_map)


def _trend_basis_kernel(theta_ref, rb_ref, rf_ref, back_ref, fore_ref):
    # theta tile: (TM, P*(1+Q)). Split coefficients, then two MXU matmuls,
    # each stored straight into its own exact-size output tile (no wrapper slices).
    p = rb_ref.shape[0]
    theta = theta_ref[...]
    back = jnp.dot(theta[:, :p], rb_ref[...], preferred_element_type=jnp.float32)
    fore = jnp.dot(theta[:, p:], rf_ref[...], preferred_element_type=jnp.float32)
    back_ref[...] = back.astype(back_ref.dtype)
    fore_ref[...] = fore.astype(fore_ref.dtype)


def make_trend_basis_params(degree_of_polynomial: int, backcast_size: int,
                            forecast_size: int, out_features: int = 1):
    """Deterministic polynomial bases (identical to the PyTorch init) plus the
    kernel RHS matrices.

    Returns (backcast_rhs (P, Tb), forecast_rhs (P*Q, Tf*Q),
             backcast_basis (P, Tb), forecast_basis (P, Tf))."""
    P = degree_of_polynomial + 1
    Q = out_features
    Tb, Tf = backcast_size, forecast_size

    backcast_basis = np.concatenate(
        [np.power(np.arange(Tb, dtype=float) / Tb, i)[None, :] for i in range(P)]
    ).astype(np.float32)                                   # (P, Tb)
    forecast_basis = np.concatenate(
        [np.power(np.arange(Tf, dtype=float) / Tf, i)[None, :] for i in range(P)]
    ).astype(np.float32)                                   # (P, Tf)

    backcast_rhs = backcast_basis                          # (P, Tb)
    # kron(forecast_basis, I_Q)[p*Q+q, t*Q+q'] = forecast_basis[p,t] * (q==q'):
    # maps flat p-major/q-minor theta columns -> flat t-major/q-minor output columns,
    # so einsum('bpq,pt->btq') becomes a single matmul with no transposes.
    forecast_rhs = np.kron(forecast_basis, np.eye(Q, dtype=np.float32))  # (P*Q, Tf*Q)

    return (jnp.asarray(backcast_rhs), jnp.asarray(forecast_rhs),
            jnp.asarray(backcast_basis), jnp.asarray(forecast_basis))


def trend_basis_forward(theta, backcast_rhs, forecast_rhs, out_features: int,
                        out_dtype=jnp.float32):
    """theta: (B, P*(1+Q)) f32. Returns (backcast (B, Tb), forecast (B, Tf, Q))."""
    B, K = theta.shape
    P, Tb = backcast_rhs.shape
    PQ, TfQ = forecast_rhs.shape
    Q = out_features
    assert PQ == P * Q and K == P * (1 + Q) and TfQ % Q == 0
    Tf = TfQ // Q

    in_bytes = jnp.dtype(theta.dtype).itemsize
    out_bytes = jnp.dtype(out_dtype).itemsize
    rhs_bytes = 4 * (P * Tb + PQ * TfQ)

    # Per-row VMEM cost: double-buffered theta tile + double-buffered output tiles.
    row_bytes = 2 * (in_bytes * K + out_bytes * (Tb + TfQ))
    budget_rows = (_VMEM_BUDGET - _VMEM_SLACK - 2 * rhs_bytes) // max(row_bytes, 1)
    budget_rows = max(_SUBLANES, _round_down(max(budget_rows, 0), _SUBLANES))

    TM = min(_round_up(B, _SUBLANES), budget_rows, _MAX_ROW_TILE)
    # Guarantee >= 2 grid steps whenever the batch can be split so the "parallel"
    # axis shards across both TensorCores on v7x (extra step is noise on v5e/v6e).
    if B > _SUBLANES and TM >= _round_up(B, _SUBLANES):
        TM = max(_SUBLANES, _round_up(pl.cdiv(B, 2), _SUBLANES))
    grid = (pl.cdiv(B, TM),)

    # Real VMEM requirement (RHS counted double-buffered to cover the fallback path).
    vmem_need = (2 * TM * in_bytes * K
                 + 2 * TM * out_bytes * (Tb + TfQ)
                 + 2 * rhs_bytes + _VMEM_SLACK)
    vmem_limit = int(min(max(vmem_need, 8 * 1024 * 1024), 48 * 1024 * 1024))

    out_back, out_fore = pl.pallas_call(
        _trend_basis_kernel,
        out_shape=(jax.ShapeDtypeStruct((B, Tb), out_dtype),
                   jax.ShapeDtypeStruct((B, TfQ), out_dtype)),
        grid=grid,
        in_specs=[
            pl.BlockSpec((TM, K), lambda i: (i, 0)),          # theta tile, pipelined
            _resident_spec((P, Tb), 4 * P * Tb),              # backcast basis, resident
            _resident_spec((PQ, TfQ), 4 * PQ * TfQ),          # forecast kron basis, resident
        ],
        out_specs=(
            pl.BlockSpec((TM, Tb), lambda i: (i, 0)),         # exact-size backcast
            pl.BlockSpec((TM, TfQ), lambda i: (i, 0)),        # exact-size flat forecast
        ),
        compiler_params=pltpu.CompilerParams(
            dimension_semantics=("parallel",),                # dual-TC sharding on v7x
            vmem_limit_bytes=vmem_limit,
        ),
    )(theta, backcast_rhs, forecast_rhs)

    # Contiguous reshape only (t-major / q-minor) -> free, no HBM copy.
    return out_back, out_fore.reshape(B, Tf, Q)


if __name__ == "__main__":
    # Small deterministic example consistent with the module.
    degree_of_polynomial = 3          # -> P = 4
    backcast_size = 16                # Tb
    forecast_size = 8                 # Tf
    out_features = 2                  # Q
    batch = 8                         # B

    P = degree_of_polynomial + 1
    theta_dim = P * (1 + out_features)

    backcast_rhs, forecast_rhs, backcast_basis, forecast_basis = make_trend_basis_params(
        degree_of_polynomial, backcast_size, forecast_size, out_features
    )

    key = jax.random.PRNGKey(0)
    theta = jax.random.normal(key, (batch, theta_dim), dtype=jnp.float32)

    backcast, forecast = trend_basis_forward(
        theta, backcast_rhs, forecast_rhs, out_features
    )
    backcast = jax.block_until_ready(backcast)
    forecast = jax.block_until_ready(forecast)

    # Reference check against pure-JAX einsum (same math as the PyTorch module).
    bt = theta[:, :P]
    ft = theta[:, P:].reshape(batch, P, out_features)
    ref_back = jnp.einsum("bp,pt->bt", bt, backcast_basis)
    ref_fore = jnp.einsum("bpq,pt->btq", ft, forecast_basis)
    assert backcast.shape == (batch, backcast_size)
    assert forecast.shape == (batch, forecast_size, out_features)
    np.testing.assert_allclose(np.asarray(backcast), np.asarray(ref_back),
                               rtol=1e-5, atol=1e-5)
    np.testing.assert_allclose(np.asarray(forecast), np.asarray(ref_fore),
                               rtol=1e-5, atol=1e-5)

    print("KERNEL_OK")
</pallas_src>

<mosaic_0001>
module attributes {stable_mosaic.version = 11 : i64} {
  func.func @_trend_basis_kernel(%arg0: i32, %arg1: memref<8x12xf32, #tpu.memory_space<vmem>>, %arg2: memref<4x16xf32, #tpu.memory_space<vmem>>, %arg3: memref<8x16xf32, #tpu.memory_space<vmem>>, %arg4: memref<8x16xf32, #tpu.memory_space<vmem>>, %arg5: memref<8x16xf32, #tpu.memory_space<vmem>>) attributes {dimension_semantics = [#tpu.dimension_semantics<parallel>], iteration_bounds = array<i64: 1>, scalar_prefetch = 0 : i64, scratch_operands = 0 : i64, tpu.core_type = #tpu.core_type<tc>, window_params = [{transform_indices = @transform_0, window_bounds = array<i64: 8, 12>}, {pipeline_mode = #tpu.pipeline_mode<synchronous>, transform_indices = @transform_1, window_bounds = array<i64: 4, 16>}, {pipeline_mode = #tpu.pipeline_mode<synchronous>, transform_indices = @transform_2, window_bounds = array<i64: 8, 16>}, {transform_indices = @transform_3, window_bounds = array<i64: 8, 16>}, {transform_indices = @transform_4, window_bounds = array<i64: 8, 16>}]} {
    %c0 = arith.constant 0 : index
    %c0_0 = arith.constant 0 : index
    %0 = vector.load %arg1[%c0, %c0_0] : memref<8x12xf32, #tpu.memory_space<vmem>>, vector<8x12xf32>
    %1 = vector.extract_strided_slice %0 {offsets = [0, 0], sizes = [8, 4], strides = [1, 1]} : vector<8x12xf32> to vector<8x4xf32>
    %c0_1 = arith.constant 0 : index
    %c0_2 = arith.constant 0 : index
    %2 = vector.load %arg2[%c0_1, %c0_2] : memref<4x16xf32, #tpu.memory_space<vmem>>, vector<4x16xf32>
    %cst = arith.constant dense<0.000000e+00> : vector<8x16xf32>
    %3 = tpu.matmul %1, %2, %cst {dimension_numbers = #tpu.dot_dimension_numbers<[1], [0], [0], [1], [0, 0, 1, 1], [], []>} : vector<8x4xf32>, vector<4x16xf32>, vector<8x16xf32> -> vector<8x16xf32>
    %4 = vector.extract_strided_slice %0 {offsets = [0, 4], sizes = [8, 8], strides = [1, 1]} : vector<8x12xf32> to vector<8x8xf32>
    %c0_3 = arith.constant 0 : index
    %c0_4 = arith.constant 0 : index
    %5 = vector.load %arg3[%c0_3, %c0_4] : memref<8x16xf32, #tpu.memory_space<vmem>>, vector<8x16xf32>
    %cst_5 = arith.constant dense<0.000000e+00> : vector<8x16xf32>
    %6 = tpu.matmul %4, %5, %cst_5 {dimension_numbers = #tpu.dot_dimension_numbers<[1], [0], [0], [1], [0, 0, 1, 1], [], []>} : vector<8x8xf32>, vector<8x16xf32>, vector<8x16xf32> -> vector<8x16xf32>
    %c0_6 = arith.constant 0 : index
    %c0_7 = arith.constant 0 : index
    %7 = vector.load %arg4[%c0_6, %c0_7] : memref<8x16xf32, #tpu.memory_space<vmem>>, vector<8x16xf32>
    tpu.vector_store %arg4[%c0_6, %c0_7], %3 {strides = array<i32>} : memref<8x16xf32, #tpu.memory_space<vmem>>, vector<8x16xf32>,
    %c0_8 = arith.constant 0 : index
    %c0_9 = arith.constant 0 : index
    %8 = vector.load %arg5[%c0_8, %c0_9] : memref<8x16xf32, #tpu.memory_space<vmem>>, vector<8x16xf32>
    tpu.vector_store %arg5[%c0_8, %c0_9], %6 {strides = array<i32>} : memref<8x16xf32, #tpu.memory_space<vmem>>, vector<8x16xf32>,
    return
  }
  func.func @transform_0(%arg0: i32) -> (i32, i32) {
    %c0_i32 = arith.constant 0 : i32
    %c0_i32_0 = arith.constant 0 : i32
    return %arg0, %c0_i32 : i32, i32
  }
  func.func @transform_1(%arg0: i32) -> (i32, i32) {
    %c0_i32 = arith.constant 0 : i32
    %c0_i32_0 = arith.constant 0 : i32
    %c0_i32_1 = arith.constant 0 : i32
    return %c0_i32, %c0_i32_0 : i32, i32
  }
  func.func @transform_2(%arg0: i32) -> (i32, i32) {
    %c0_i32 = arith.constant 0 : i32
    %c0_i32_0 = arith.constant 0 : i32
    %c0_i32_1 = arith.constant 0 : i32
    return %c0_i32, %c0_i32_0 : i32, i32
  }
  func.func @transform_3(%arg0: i32) -> (i32, i32) {
    %c0_i32 = arith.constant 0 : i32
    %c0_i32_0 = arith.constant 0 : i32
    return %arg0, %c0_i32 : i32, i32
  }
  func.func @transform_4(%arg0: i32) -> (i32, i32) {
    %c0_i32 = arith.constant 0 : i32
    %c0_i32_0 = arith.constant 0 : i32
    return %arg0, %c0_i32 : i32, i32
  }
}

</mosaic_0001>

<llo_original>
// kernel: tpu_custom_call.1
$region0: #{tpu_custom_call.1}
  #allocation0 [shape = 'u32[]', space=smem, size = 0x4, offset = 0x4, fixed_abs, tag = 'smem constant byte address 0x4 - core index']
  #allocation1 [shape = 'u32[144,128]{1,0:T(1,128)}', space=vmem, size = 0x12000, scoped, tag = 'internal scratch']
  %s0 = inlined_call_operand.hbm [shape: f32[8,12], index: 0, kind: input, shape index: {}]
  %s1 = inlined_call_operand.hbm [shape: f32[4,16], index: 1, kind: input, shape index: {}]
  %s2 = inlined_call_operand.hbm [shape: f32[8,16], index: 2, kind: input, shape index: {}]
  %s3 = inlined_call_operand.hbm [shape: f32[8,16], index: 3, kind: output, shape index: {0}]
  %s4 = inlined_call_operand.hbm [shape: f32[8,16], index: 4, kind: output, shape index: {1}]
  %5 = xla_tuple %s3, %s4
  %s6 = sld [smem:[#allocation0]]
  $region42: #{tpu_custom_call.1} parent=0
    _
  %s8 = ssub.s32 1, %s6
  %s9 = scalar_select 0, %s8, %s6
  $region1: #{tpu_custom_call.1} parent=0
    #allocation2 [shape = 'u8[4096]{0}', space=vmem, size = 0x1000, scoped, tag = 'input window, operand 0, single buffered']
    #allocation3 [shape = 's32[1]{0}', space=sflag, size = 0x4, scoped, tag = 'scoped memory for tpu_custom_call.1']
    #allocation4 [shape = 's32[1]{0}', space=sflag, size = 0x4, scoped, tag = 'scoped memory for tpu_custom_call.1']
    #allocation5 [shape = 'u8[2048]{0}', space=vmem, size = 0x800, scoped, tag = 'input window, operand 1, single buffered']
    #allocation6 [shape = 's32[1]{0}', space=sflag, size = 0x4, scoped, tag = 'scoped memory for tpu_custom_call.1']
    #allocation7 [shape = 'u8[4096]{0}', space=vmem, size = 0x1000, scoped, tag = 'input window, operand 2, single buffered']
    #allocation8 [shape = 'u8[4096]{0}', space=vmem, size = 0x1000, scoped, tag = 'output window, operand 0, single buffered']
    #allocation9 [shape = 'u8[4096]{0}', space=vmem, size = 0x1000, scoped, tag = 'output window, operand 1, single buffered']
    #allocation10 [shape = 's32[1]{0}', space=sflag, size = 0x4, scoped, tag = 'scoped memory for tpu_custom_call.1']
    %10 = vsyncpa [#allocation3], 0
    %11 = vsyncpa [#allocation6], 0
    %12 = vsyncpa [#allocation4], 0
    %13 = vsyncpa [#allocation10], 0
    // Predicated region
    $region2: #{tpu_custom_call.1} parent=1 // pred_check
      _
    $region3: #{tpu_custom_call.1} parent=1 // pred_check_branch
      %15 = sbr.rel (0) target = $region5
    $region4: #{tpu_custom_call.1} parent=1 // pred_region
      %s17 = ssub.s32 128, 128
      %18 = vsyncadd [#allocation3], %s17
      %s20 = sshll.u32 [#allocation2], 4
      %s21 = int_to_ptr.vmem [resolvable:$true] %s20
      %23 = dma.hbm_to_vmem [thread:$0]  %s0, 128, %s21, [#allocation3]
    $region5: #{tpu_custom_call.1} parent=1 // pred_fallthru
      _
    // Predicated region
    $region6: #{tpu_custom_call.1} parent=1 // pred_check
      _
    $region7: #{tpu_custom_call.1} parent=1 // pred_check_branch
      %25 = sbr.rel (0) target = $region9
    $region8: #{tpu_custom_call.1} parent=1 // pred_region
      %s27 = ssub.s32 64, 64
      %28 = vsyncadd [#allocation6], %s27
      %s30 = sshll.u32 [#allocation5], 4
      %s31 = int_to_ptr.vmem [resolvable:$true] %s30
      %33 = dma.hbm_to_vmem [thread:$0]  %s1, 64, %s31, [#allocation6]
    $region9: #{tpu_custom_call.1} parent=1 // pred_fallthru
      _
    // Predicated region
    $region10: #{tpu_custom_call.1} parent=1 // pred_check
      _
    $region11: #{tpu_custom_call.1} parent=1 // pred_check_branch
      %35 = sbr.rel (0) target = $region13
    $region12: #{tpu_custom_call.1} parent=1 // pred_region
      %s37 = ssub.s32 128, 128
      %38 = vsyncadd [#allocation6], %s37
      %s40 = sshll.u32 [#allocation7], 4
      %s41 = int_to_ptr.vmem [resolvable:$true] %s40
      %43 = dma.hbm_to_vmem [thread:$0]  %s2, 128, %s41, [#allocation6]
    $region13: #{tpu_custom_call.1} parent=1 // pred_fallthru
      _
    // Predicated region
    $region14: #{tpu_custom_call.1} parent=1 // pred_check
      _
    $region15: #{tpu_custom_call.1} parent=1 // pred_check_branch
      %45 = sbr.rel (0) target = $region17
    $region16: #{tpu_custom_call.1} parent=1 // pred_region
      %46 = dma.done [#allocation3], 128
    $region17: #{tpu_custom_call.1} parent=1 // pred_fallthru
      _
    // Predicated region
    $region18: #{tpu_custom_call.1} parent=1 // pred_check
      _
    $region19: #{tpu_custom_call.1} parent=1 // pred_check_branch
      %48 = sbr.rel (0) target = $region21
    $region20: #{tpu_custom_call.1} parent=1 // pred_region
      %49 = dma.done [#allocation6], 64
    $region21: #{tpu_custom_call.1} parent=1 // pred_fallthru
      _
    // Predicated region
    $region22: #{tpu_custom_call.1} parent=1 // pred_check
      _
    $region23: #{tpu_custom_call.1} parent=1 // pred_check_branch
      %51 = sbr.rel (0) target = $region25
    $region24: #{tpu_custom_call.1} parent=1 // pred_region
      %52 = dma.done [#allocation6], 128
    $region25: #{tpu_custom_call.1} parent=1 // pred_fallthru
      _
    %v53 = vld [vmem:[#allocation2] sm:$0xff]
    %v54 = vld [vmem:[#allocation5] sm:$0xf]
    %vm55 = vcmask 31744
    %v57 = vsel %vm55, %v53, 0
    %vm59 = vcmask 1043456
    %v61 = vsel %vm59, %v54, 0
    %63 = vmatprep.subr.mxu0 0.0
    %64 = vmatpush1.msra.mxu0 0.0
    %65 = vmatprep.subr.mxu0 0.0
    %66 = vmatpush1.msra.mxu0 0.0
    %67 = vmatprep.subr.mxu0 0.0
    %68 = vmatpush1.msra.mxu0 0.0
    %69 = vmatprep.subr.mxu0 0.0
    %70 = vmatpush1.msra.mxu0 0.0
    %71 = vmatprep.subr.mxu0 0.0
    %72 = vmatpush1.msra.mxu0 0.0
    %73 = vmatprep.subr.mxu0 0.0
    %74 = vmatpush1.msra.mxu0 0.0
    %75 = vmatprep.subr.mxu0 0.0
    %76 = vmatpush1.msra.mxu0 0.0
    %77 = vmatprep.subr.mxu0 0.0
    %78 = vmatpush1.msra.mxu0 0.0
    %79 = vmatprep.subr.mxu0 0.0
    %80 = vmatpush1.msra.mxu0 0.0
    %81 = vmatprep.subr.mxu0 0.0
    %82 = vmatpush1.msra.mxu0 0.0
    %83 = vmatprep.subr.mxu0 0.0
    %84 = vmatpush1.msra.mxu0 0.0
    %85 = vmatprep.subr.mxu0 0.0
    %86 = vmatpush1.msra.mxu0 0.0
    %87 = vmatprep.subr.mxu0 0.0
    %88 = vmatpush1.msra.mxu0 0.0
    %89 = vmatprep.subr.mxu0 0.0
    %90 = vmatpush1.msra.mxu0 0.0
    %91 = vmatprep.subr.mxu0 0.0
    %92 = vmatpush1.msra.mxu0 0.0
    %93 = vmatprep.subr.mxu0 0.0
    %94 = vmatpush1.msra.mxu0 %v61
    %95 = vmatprep.subr.mxu0 0.0
    %96 = vmatpush2.msra.mxu0 0.0
    %97 = vmatprep.subr.mxu0 0.0
    %98 = vmatpush2.msra.mxu0 0.0
    %99 = vmatprep.subr.mxu0 0.0
    %100 = vmatpush2.msra.mxu0 0.0
    %101 = vmatprep.subr.mxu0 0.0
    %102 = vmatpush2.msra.mxu0 0.0
    %103 = vmatprep.subr.mxu0 0.0
    %104 = vmatpush2.msra.mxu0 0.0
    %105 = vmatprep.subr.mxu0 0.0
    %106 = vmatpush2.msra.mxu0 0.0
    %107 = vmatprep.subr.mxu0 0.0
    %108 = vmatpush2.msra.mxu0 0.0
    %109 = vmatprep.subr.mxu0 0.0
    %110 = vmatpush2.msra.mxu0 0.0
    %111 = vmatprep.subr.mxu0 0.0
    %112 = vmatpush2.msra.mxu0 0.0
    %113 = vmatprep.subr.mxu0 0.0
    %114 = vmatpush2.msra.mxu0 0.0
    %115 = vmatprep.subr.mxu0 0.0
    %116 = vmatpush2.msra.mxu0 0.0
    %117 = vmatprep.subr.mxu0 0.0
    %118 = vmatpush2.msra.mxu0 0.0
    %119 = vmatprep.subr.mxu0 0.0
    %120 = vmatpush2.msra.mxu0 0.0
    %121 = vmatprep.subr.mxu0 0.0
    %122 = vmatpush2.msra.mxu0 0.0
    %123 = vmatprep.subr.mxu0 0.0
    %124 = vmatpush2.msra.mxu0 0.0
    %125 = vmatprep.subr.mxu0 0.0
    %126 = vmatpush2.msra.mxu0 0.0
    %127 = vmatprep.mubr.f32.mxu0 0.0
    %128 = vmatmul.mubr.f32.gmra.mxu0 %v57
    %v129 = vpop.f32.mrf.mxu0
    %v130 = vadd.f32 0.0, %v129
    %v131 = vpop.f32.mrf.mxu0
    %132 = vdwg.mxu0
    %v133 = vld [vmem:[#allocation7] sm:$0xff]
    %134 = vrot.lane.b32.xlu0 %v53, 124
    %v135 = vpop.permute.xlu0 %134
    %vm136 = vcmask 64512
    %v137 = vsel %vm136, %v135, 0
    %139 = vmatprep.subr.mxu0 0.0
    %140 = vmatpush1.msra.mxu0 0.0
    %141 = vmatprep.subr.mxu0 0.0
    %142 = vmatpush1.msra.mxu0 0.0
    %143 = vmatprep.subr.mxu0 0.0
    %144 = vmatpush1.msra.mxu0 0.0
    %145 = vmatprep.subr.mxu0 0.0
    %146 = vmatpush1.msra.mxu0 0.0
    %147 = vmatprep.subr.mxu0 0.0
    %148 = vmatpush1.msra.mxu0 0.0
    %149 = vmatprep.subr.mxu0 0.0
    %150 = vmatpush1.msra.mxu0 0.0
    %151 = vmatprep.subr.mxu0 0.0
    %152 = vmatpush1.msra.mxu0 0.0
    %153 = vmatprep.subr.mxu0 0.0
    %154 = vmatpush1.msra.mxu0 0.0
    %155 = vmatprep.subr.mxu0 0.0
    %156 = vmatpush1.msra.mxu0 0.0
    %157 = vmatprep.subr.mxu0 0.0
    %158 = vmatpush1.msra.mxu0 0.0
    %159 = vmatprep.subr.mxu0 0.0
    %160 = vmatpush1.msra.mxu0 0.0
    %161 = vmatprep.subr.mxu0 0.0
    %162 = vmatpush1.msra.mxu0 0.0
    %163 = vmatprep.subr.mxu0 0.0
    %164 = vmatpush1.msra.mxu0 0.0
    %165 = vmatprep.subr.mxu0 0.0
    %166 = vmatpush1.msra.mxu0 0.0
    %167 = vmatprep.subr.mxu0 0.0
    %168 = vmatpush1.msra.mxu0 0.0
    %169 = vmatprep.subr.mxu0 0.0
    %170 = vmatpush1.msra.mxu0 %v133
    %171 = vmatprep.subr.mxu0 0.0
    %172 = vmatpush2.msra.mxu0 0.0
    %173 = vmatprep.subr.mxu0 0.0
    %174 = vmatpush2.msra.mxu0 0.0
    %175 = vmatprep.subr.mxu0 0.0
    %176 = vmatpush2.msra.mxu0 0.0
    %177 = vmatprep.subr.mxu0 0.0
    %178 = vmatpush2.msra.mxu0 0.0
    %179 = vmatprep.subr.mxu0 0.0
    %180 = vmatpush2.msra.mxu0 0.0
    %181 = vmatprep.subr.mxu0 0.0
    %182 = vmatpush2.msra.mxu0 0.0
    %183 = vmatprep.subr.mxu0 0.0
    %184 = vmatpush2.msra.mxu0 0.0
    %185 = vmatprep.subr.mxu0 0.0
    %186 = vmatpush2.msra.mxu0 0.0
    %187 = vmatprep.subr.mxu0 0.0
    %188 = vmatpush2.msra.mxu0 0.0
    %189 = vmatprep.subr.mxu0 0.0
    %190 = vmatpush2.msra.mxu0 0.0
    %191 = vmatprep.subr.mxu0 0.0
    %192 = vmatpush2.msra.mxu0 0.0
    %193 = vmatprep.subr.mxu0 0.0
    %194 = vmatpush2.msra.mxu0 0.0
    %195 = vmatprep.subr.mxu0 0.0
    %196 = vmatpush2.msra.mxu0 0.0
    %197 = vmatprep.subr.mxu0 0.0
    %198 = vmatpush2.msra.mxu0 0.0
    %199 = vmatprep.subr.mxu0 0.0
    %200 = vmatpush2.msra.mxu0 0.0
    %201 = vmatprep.subr.mxu0 0.0
    %202 = vmatpush2.msra.mxu0 0.0
    %203 = vmatprep.mubr.f32.mxu0 0.0
    %204 = vmatmul.mubr.f32.gmra.mxu0 %v137
    %v205 = vpop.f32.mrf.mxu0
    %v206 = vadd.f32 0.0, %v205
    %v207 = vpop.f32.mrf.mxu0
    %208 = vdwg.mxu0
    %vm209 = vcmask 130048
    %210 = vst.msk [vmem:[#allocation8] sm:$0xff] %vm209, %v130
    %211 = vst.msk [vmem:[#allocation9] sm:$0xff] %vm209, %v206
    // Predicated region
    $region26: #{tpu_custom_call.1} parent=1 // pred_check
      _
    $region27: #{tpu_custom_call.1} parent=1 // pred_check_branch
      %213 = sbr.rel (0) target = $region29
    $region28: #{tpu_custom_call.1} parent=1 // pred_region
      %s215 = ssub.s32 128, 128
      %216 = vsyncadd [#allocation4], %s215
      %s218 = sshll.u32 [#allocation8], 4
      %s219 = int_to_ptr.vmem [resolvable:$true] %s218
      %221 = dma.vmem_to_hbm [thread:$0]  %s219, 128, %s3, [#allocation4]
    $region29: #{tpu_custom_call.1} parent=1 // pred_fallthru
      _
    // Predicated region
    $region30: #{tpu_custom_call.1} parent=1 // pred_check
      _
    $region31: #{tpu_custom_call.1} parent=1 // pred_check_branch
      %223 = sbr.rel (0) target = $region33
    $region32: #{tpu_custom_call.1} parent=1 // pred_region
      %s225 = ssub.s32 128, 128
      %226 = vsyncadd [#allocation10], %s225
      %s228 = sshll.u32 [#allocation9], 4
      %s229 = int_to_ptr.vmem [resolvable:$true] %s228
      %231 = dma.vmem_to_hbm [thread:$0]  %s229, 128, %s4, [#allocation10]
    $region33: #{tpu_custom_call.1} parent=1 // pred_fallthru
      _
    // Predicated region
    $region34: #{tpu_custom_call.1} parent=1 // pred_check
      _
    $region35: #{tpu_custom_call.1} parent=1 // pred_check_branch
      %233 = sbr.rel (0) target = $region37
    $region36: #{tpu_custom_call.1} parent=1 // pred_region
      %234 = dma.done [#allocation4], 128
    $region37: #{tpu_custom_call.1} parent=1 // pred_fallthru
      _
    // Predicated region
    $region38: #{tpu_custom_call.1} parent=1 // pred_check
      _
    $region39: #{tpu_custom_call.1} parent=1 // pred_check_branch
      %236 = sbr.rel (0) target = $region41
    $region40: #{tpu_custom_call.1} parent=1 // pred_region
      %237 = dma.done [#allocation10], 128
    $region41: #{tpu_custom_call.1} parent=1 // pred_fallthru
      _
    %238 = vsyncpa [#allocation3], 1
    %239 = vsyncpa [#allocation6], 1
    %240 = vsyncpa [#allocation4], 1
    %241 = vsyncpa [#allocation10], 1

</llo_original>
